<compile_context>
chip_gen: v7x
topology: tpu7x:2x2x1
jax: 0.10.0
libtpu: 0.0.40
codegen_flags: <defaults>
</compile_context>

<pallas_src>
import numpy as np
import jax
import jax.numpy as jnp
from jax import lax
from jax.experimental import pallas as pl
from jax.experimental.pallas import tpu as pltpu

MATMUL_DTYPE = jnp.bfloat16   # MXU input dtype (v6e/v7x fast path); accumulation is f32
ACC_DTYPE = jnp.float32

_COMPILER_PARAMS = pltpu.CompilerParams(
    dimension_semantics=("parallel",),          # batch axis
    vmem_limit_bytes=48 * 1024 * 1024,          # explicit; fits v7x's 64 MiB VMEM
)


# ----------------------------------------------------------------------------
# Static helpers for 2x bilinear upsampling with align_corners=True
# ----------------------------------------------------------------------------
def _lerp_taps(s):
    """Static (i0, i1, frac) per output index, matching
    F.interpolate(scale_factor=2, mode='bilinear', align_corners=True)."""
    taps = []
    for i in range(2 * s):
        if s == 1:
            taps.append((0, 0, 0.0))
            continue
        src = i * (s - 1) / (2 * s - 1)
        i0 = int(np.floor(src))
        i1 = min(i0 + 1, s - 1)
        taps.append((i0, i1, float(src - i0)))
    return taps


def _upsample_matrix(s):
    """(2s, s) interpolation matrix (used only by the pure-JAX reference)."""
    so = 2 * s
    m = np.zeros((so, s), np.float32)
    for i, (i0, i1, f) in enumerate(_lerp_taps(s)):
        m[i, i0] += 1.0 - f
        m[i, i1] += f
    return m


# ----------------------------------------------------------------------------
# In-kernel building blocks (operate on jnp values that live in VMEM)
# ----------------------------------------------------------------------------
def _pad_hw(x):
    """(H, W, C) -> (H+2, W+2, C) zero border, built with concats in VMEM."""
    H, W, C = x.shape
    zr = jnp.zeros((1, W, C), x.dtype)
    x = jnp.concatenate([zr, x, zr], axis=0)
    zc = jnp.zeros((H + 2, 1, C), x.dtype)
    return jnp.concatenate([zc, x, zc], axis=1)


def _conv3x3_acc(xpad, w_ref, acc):
    """Accumulate a 3x3 'same' conv.

    xpad:  (H+2, W+2, Cin) zero-padded input (bf16)
    w_ref: (3, 3*Cin, Cout) ref, row index of the last matmul = kx*Cin + ci
    acc:   (H*W, Cout) f32 accumulator

    3 MXU matmuls with K = 3*Cin: the three kx taps are packed along the lane
    dim into one im2col-style patch per ky (no 9 tiny K=Cin dots).
    """
    Hp, Wp, Cin = xpad.shape
    H, W = Hp - 2, Wp - 2
    for ky in range(3):
        patch = jnp.concatenate(
            [xpad[ky:ky + H, kx:kx + W, :] for kx in range(3)], axis=-1)   # (H, W, 3*Cin)
        patch = patch.reshape(H * W, 3 * Cin)
        acc = acc + jnp.dot(patch, w_ref[ky], preferred_element_type=ACC_DTYPE)
    return acc


# ----------------------------------------------------------------------------
# Kernel 1: fused 2x bilinear upsample (align_corners=True) + 3x3 upconv
# ----------------------------------------------------------------------------
def _upsample_upconv_kernel(x_ref, w_ref, b_ref, o_ref):
    # x_ref: (1, H, W, Cin) f32     w_ref: (3, 3*Cin, Cout) bf16
    # b_ref: (1, Cout) f32          o_ref: (1, 2H, 2W, Cout) f32
    _, H, W, Cin = x_ref.shape
    _, Ho, Wo, Cout = o_ref.shape
    x = x_ref[0]                                            # (H, W, Cin) f32

    # --- upsample along H (VPU weighted adds), conv zero-pad rows folded in ---
    zrow = jnp.zeros((1, W, Cin), x.dtype)
    rows = [zrow]
    for (i0, i1, f) in _lerp_taps(H):
        r = x[i0:i0 + 1]
        if f != 0.0:
            r = (1.0 - f) * r + f * x[i1:i1 + 1]
        rows.append(r)
    rows.append(zrow)
    xh = jnp.concatenate(rows, axis=0)                      # (2H+2, W, Cin)

    # --- upsample along W (VPU weighted adds), conv zero-pad cols folded in ---
    zcol = jnp.zeros((Ho + 2, 1, Cin), x.dtype)
    cols = [zcol]
    for (j0, j1, g) in _lerp_taps(W):
        c = xh[:, j0:j0 + 1, :]
        if g != 0.0:
            c = (1.0 - g) * c + g * xh[:, j1:j1 + 1, :]
        cols.append(c)
    cols.append(zcol)
    up = jnp.concatenate(cols, axis=1)                      # (2H+2, 2W+2, Cin) padded

    # --- 3x3 upconv on the upsampled tile (never leaves VMEM) ---
    acc = jnp.zeros((Ho * Wo, Cout), ACC_DTYPE)
    acc = _conv3x3_acc(up.astype(MATMUL_DTYPE), w_ref, acc)
    acc = acc + b_ref[...]
    o_ref[...] = acc.reshape(1, Ho, Wo, Cout).astype(o_ref.dtype)


def upsample_upconv(x, w, b):
    """x: (N, H, W, Cin) -> bilinear x2 (align_corners=True) + 3x3 conv -> (N, 2H, 2W, Cout)."""
    N, H, W, Cin = x.shape
    Cout = w.shape[-1]
    Ho, Wo = 2 * H, 2 * W
    wf = w.reshape(3, 3 * Cin, Cout).astype(MATMUL_DTYPE)
    b2 = b.reshape(1, Cout).astype(jnp.float32)
    return pl.pallas_call(
        _upsample_upconv_kernel,
        out_shape=jax.ShapeDtypeStruct((N, Ho, Wo, Cout), x.dtype),
        grid=(N,),
        in_specs=[
            pl.BlockSpec((1, H, W, Cin), lambda n: (n, 0, 0, 0)),
            pl.BlockSpec((3, 3 * Cin, Cout), lambda n: (0, 0, 0)),
            pl.BlockSpec((1, Cout), lambda n: (0, 0)),
        ],
        out_specs=pl.BlockSpec((1, Ho, Wo, Cout), lambda n: (n, 0, 0, 0)),
        compiler_params=_COMPILER_PARAMS,
    )(x, wf, b2)


# ----------------------------------------------------------------------------
# Kernel 2: fused channel-concat([left, x]) + 3x3 conv (conv1)
# ----------------------------------------------------------------------------
def _concat_conv3x3_kernel(l_ref, x_ref, wl_ref, wx_ref, b_ref, o_ref):
    # l_ref: (1, H, W, Cl)  x_ref: (1, H, W, Cx)
    # wl_ref: (3, 3*Cl, Cout) bf16   wx_ref: (3, 3*Cx, Cout) bf16
    _, H, W, Cout = o_ref.shape
    lpad = _pad_hw(l_ref[0]).astype(MATMUL_DTYPE)
    xpad = _pad_hw(x_ref[0]).astype(MATMUL_DTYPE)
    acc = jnp.zeros((H * W, Cout), ACC_DTYPE)
    acc = _conv3x3_acc(lpad, wl_ref, acc)     # contribution of the `left` half of Cin
    acc = _conv3x3_acc(xpad, wx_ref, acc)     # contribution of the upconv-output half
    acc = acc + b_ref[...]
    o_ref[...] = acc.reshape(1, H, W, Cout).astype(o_ref.dtype)


def concat_conv3x3(left, x, w, b):
    """conv3x3(concat([left, x], channel)) without materializing the concat in HBM."""
    N, H, W, Cx = x.shape
    Cl = left.shape[-1]
    Cout = w.shape[-1]
    wl = w[:, :, :Cl, :].reshape(3, 3 * Cl, Cout).astype(MATMUL_DTYPE)
    wx = w[:, :, Cl:, :].reshape(3, 3 * Cx, Cout).astype(MATMUL_DTYPE)
    b2 = b.reshape(1, Cout).astype(jnp.float32)
    return pl.pallas_call(
        _concat_conv3x3_kernel,
        out_shape=jax.ShapeDtypeStruct((N, H, W, Cout), x.dtype),
        grid=(N,),
        in_specs=[
            pl.BlockSpec((1, H, W, Cl), lambda n: (n, 0, 0, 0)),
            pl.BlockSpec((1, H, W, Cx), lambda n: (n, 0, 0, 0)),
            pl.BlockSpec((3, 3 * Cl, Cout), lambda n: (0, 0, 0)),
            pl.BlockSpec((3, 3 * Cx, Cout), lambda n: (0, 0, 0)),
            pl.BlockSpec((1, Cout), lambda n: (0, 0)),
        ],
        out_specs=pl.BlockSpec((1, H, W, Cout), lambda n: (n, 0, 0, 0)),
        compiler_params=_COMPILER_PARAMS,
    )(left, x, wl, wx, b2)


# ----------------------------------------------------------------------------
# Kernel 3: plain 3x3 "same" conv (conv2)
# ----------------------------------------------------------------------------
def _conv3x3_kernel(x_ref, w_ref, b_ref, o_ref):
    _, H, W, Cout = o_ref.shape
    xpad = _pad_hw(x_ref[0]).astype(MATMUL_DTYPE)
    acc = jnp.zeros((H * W, Cout), ACC_DTYPE)
    acc = _conv3x3_acc(xpad, w_ref, acc)
    acc = acc + b_ref[...]
    o_ref[...] = acc.reshape(1, H, W, Cout).astype(o_ref.dtype)


def conv3x3_same(x, w, b):
    N, H, W, Cin = x.shape
    Cout = w.shape[-1]
    wf = w.reshape(3, 3 * Cin, Cout).astype(MATMUL_DTYPE)
    b2 = b.reshape(1, Cout).astype(jnp.float32)
    return pl.pallas_call(
        _conv3x3_kernel,
        out_shape=jax.ShapeDtypeStruct((N, H, W, Cout), x.dtype),
        grid=(N,),
        in_specs=[
            pl.BlockSpec((1, H, W, Cin), lambda n: (n, 0, 0, 0)),
            pl.BlockSpec((3, 3 * Cin, Cout), lambda n: (0, 0, 0)),
            pl.BlockSpec((1, Cout), lambda n: (0, 0)),
        ],
        out_specs=pl.BlockSpec((1, H, W, Cout), lambda n: (n, 0, 0, 0)),
        compiler_params=_COMPILER_PARAMS,
    )(x, wf, b2)


# ----------------------------------------------------------------------------
# Decoder forward (NHWC activations)
# ----------------------------------------------------------------------------
def decoder_block_forward(params, down, left):
    """DecoderBlock: upsample+upconv (fused) -> concat+conv1 (fused) -> conv2."""
    x = upsample_upconv(down, params["upconv_w"], params["upconv_b"])
    x = concat_conv3x3(left, x, params["conv1_w"], params["conv1_b"])
    x = conv3x3_same(x, params["conv2_w"], params["conv2_b"])
    return x


def decoder_forward(params_list, acts):
    """acts: list of NHWC activations (encoder order, deepest last)."""
    up = acts[-1]
    for i, left in enumerate(acts[-2::-1]):
        up = decoder_block_forward(params_list[i], up, left)
    return up


def init_decoder_params(key, num_filters, num_blocks):
    """block{i+1} has out_channels = num_filters * 2**(num_blocks - 1 - i)."""
    params_list = []
    for i in range(num_blocks):
        c = num_filters * (2 ** (num_blocks - 1 - i))
        p = {}
        for name, cin, cout in (("upconv", 2 * c, c),
                                ("conv1", 2 * c, c),
                                ("conv2", c, c)):
            key, kw, kb = jax.random.split(key, 3)
            p[f"{name}_w"] = 0.05 * jax.random.normal(kw, (3, 3, cin, cout), jnp.float32)
            p[f"{name}_b"] = 0.05 * jax.random.normal(kb, (cout,), jnp.float32)
        params_list.append(p)
    return params_list


# ----------------------------------------------------------------------------
# Pure-JAX (XLA) reference for validation
# ----------------------------------------------------------------------------
def _ref_upsample(x):
    N, H, W, C = x.shape
    mh = jnp.asarray(_upsample_matrix(H))
    mw = jnp.asarray(_upsample_matrix(W))
    x = jnp.einsum("ih,nhwc->niwc", mh, x)
    x = jnp.einsum("jw,nhwc->nhjc", mw, x)
    return x


def _ref_conv(x, w, b):
    y = lax.conv_general_dilated(
        x, w, window_strides=(1, 1), padding="SAME",
        dimension_numbers=("NHWC", "HWIO", "NHWC"))
    return y + b


def _ref_block(params, down, left):
    x = _ref_upsample(down)
    x = _ref_conv(x, params["upconv_w"], params["upconv_b"])
    x = jnp.concatenate([left, x], axis=-1)
    x = _ref_conv(x, params["conv1_w"], params["conv1_b"])
    x = _ref_conv(x, params["conv2_w"], params["conv2_b"])
    return x


def _ref_decoder(params_list, acts):
    up = acts[-1]
    for i, left in enumerate(acts[-2::-1]):
        up = _ref_block(params_list[i], up, left)
    return up


if __name__ == "__main__":
    key = jax.random.PRNGKey(0)
    N = 2
    num_filters = 4
    num_blocks = 2
    base_spatial = 4  # spatial size of the deepest encoder activation

    # Encoder activations in PyTorch NCHW convention:
    #   acts[k]: channels = num_filters * 2**k, spatial = base_spatial * 2**(num_blocks-k)
    acts_nchw = []
    for k in range(num_blocks + 1):
        c = num_filters * (2 ** k)
        s = base_spatial * (2 ** (num_blocks - k))
        key, sub = jax.random.split(key)
        acts_nchw.append(jax.random.normal(sub, (N, c, s, s), jnp.float32))

    # transpose NCHW -> NHWC for the kernels
    acts_nhwc = [jnp.transpose(a, (0, 2, 3, 1)) for a in acts_nchw]

    key, pkey = jax.random.split(key)
    params_list = init_decoder_params(pkey, num_filters, num_blocks)

    out_nhwc = decoder_forward(params_list, acts_nhwc)
    out_nchw = jnp.transpose(out_nhwc, (0, 3, 1, 2))  # back to PyTorch layout
    jax.block_until_ready(out_nchw)

    expected = (N, num_filters,
                base_spatial * 2 ** num_blocks, base_spatial * 2 ** num_blocks)
    assert out_nchw.shape == expected, (out_nchw.shape, expected)
    assert bool(jnp.all(jnp.isfinite(out_nchw)))

    # Validate against the f32 XLA reference (kernels use bf16 MXU inputs with
    # f32 accumulation, so allow a small tolerance).
    ref_nhwc = _ref_decoder(params_list, acts_nhwc)
    err = float(jnp.max(jnp.abs(out_nhwc - ref_nhwc)))
    assert err < 5e-2, f"max abs err vs reference: {err}"

    print("KERNEL_OK")
</pallas_src>

<mosaic_0001>
module attributes {stable_mosaic.version = 11 : i64} {
  func.func @_upsample_upconv_kernel(%arg0: i32, %arg1: memref<1x4x4x16xf32, #tpu.memory_space<vmem>>, %arg2: memref<3x48x8xbf16, #tpu.memory_space<vmem>>, %arg3: memref<1x8xf32, #tpu.memory_space<vmem>>, %arg4: memref<1x8x8x8xf32, #tpu.memory_space<vmem>>) attributes {dimension_semantics = [#tpu.dimension_semantics<parallel>], iteration_bounds = array<i64: 2>, scalar_prefetch = 0 : i64, scratch_operands = 0 : i64, tpu.core_type = #tpu.core_type<tc>, window_params = [{transform_indices = @transform_0, window_bounds = array<i64: 1, 4, 4, 16>}, {pipeline_mode = #tpu.pipeline_mode<synchronous>, transform_indices = @transform_1, window_bounds = array<i64: 3, 48, 8>}, {pipeline_mode = #tpu.pipeline_mode<synchronous>, transform_indices = @transform_2, window_bounds = array<i64: 1, 8>}, {transform_indices = @transform_3, window_bounds = array<i64: 1, 8, 8, 8>}]} {
    %c0 = arith.constant 0 : index
    %c0_0 = arith.constant 0 : index
    %c0_1 = arith.constant 0 : index
    %c0_2 = arith.constant 0 : index
    %0 = vector.load %arg1[%c0, %c0_0, %c0_1, %c0_2] : memref<1x4x4x16xf32, #tpu.memory_space<vmem>>, vector<1x4x4x16xf32>
    %1 = vector.shape_cast %0 : vector<1x4x4x16xf32> to vector<4x4x16xf32>
    %cst = arith.constant 0.000000e+00 : f32
    %2 = vector.broadcast %cst : f32 to vector<1x4x16xf32>
    %3 = vector.extract_strided_slice %1 {offsets = [0, 0, 0], sizes = [1, 4, 16], strides = [1, 1, 1]} : vector<4x4x16xf32> to vector<1x4x16xf32>
    %4 = vector.extract_strided_slice %1 {offsets = [0, 0, 0], sizes = [1, 4, 16], strides = [1, 1, 1]} : vector<4x4x16xf32> to vector<1x4x16xf32>
    %cst_3 = arith.constant 0.571428597 : f32
    %5 = vector.broadcast %cst_3 : f32 to vector<1x4x16xf32>
    %6 = arith.mulf %5, %4 : vector<1x4x16xf32>
    %7 = vector.extract_strided_slice %1 {offsets = [1, 0, 0], sizes = [1, 4, 16], strides = [1, 1, 1]} : vector<4x4x16xf32> to vector<1x4x16xf32>
    %cst_4 = arith.constant 0.428571433 : f32
    %8 = vector.broadcast %cst_4 : f32 to vector<1x4x16xf32>
    %9 = arith.mulf %8, %7 : vector<1x4x16xf32>
    %10 = arith.addf %6, %9 : vector<1x4x16xf32>
    %11 = vector.extract_strided_slice %1 {offsets = [0, 0, 0], sizes = [1, 4, 16], strides = [1, 1, 1]} : vector<4x4x16xf32> to vector<1x4x16xf32>
    %cst_5 = arith.constant 0.142857149 : f32
    %12 = vector.broadcast %cst_5 : f32 to vector<1x4x16xf32>
    %13 = arith.mulf %12, %11 : vector<1x4x16xf32>
    %14 = vector.extract_strided_slice %1 {offsets = [1, 0, 0], sizes = [1, 4, 16], strides = [1, 1, 1]} : vector<4x4x16xf32> to vector<1x4x16xf32>
    %cst_6 = arith.constant 0.857142865 : f32
    %15 = vector.broadcast %cst_6 : f32 to vector<1x4x16xf32>
    %16 = arith.mulf %15, %14 : vector<1x4x16xf32>
    %17 = arith.addf %13, %16 : vector<1x4x16xf32>
    %18 = vector.extract_strided_slice %1 {offsets = [1, 0, 0], sizes = [1, 4, 16], strides = [1, 1, 1]} : vector<4x4x16xf32> to vector<1x4x16xf32>
    %cst_7 = arith.constant 0.714285731 : f32
    %19 = vector.broadcast %cst_7 : f32 to vector<1x4x16xf32>
    %20 = arith.mulf %19, %18 : vector<1x4x16xf32>
    %21 = vector.extract_strided_slice %1 {offsets = [2, 0, 0], sizes = [1, 4, 16], strides = [1, 1, 1]} : vector<4x4x16xf32> to vector<1x4x16xf32>
    %cst_8 = arith.constant 0.285714298 : f32
    %22 = vector.broadcast %cst_8 : f32 to vector<1x4x16xf32>
    %23 = arith.mulf %22, %21 : vector<1x4x16xf32>
    %24 = arith.addf %20, %23 : vector<1x4x16xf32>
    %25 = vector.extract_strided_slice %1 {offsets = [1, 0, 0], sizes = [1, 4, 16], strides = [1, 1, 1]} : vector<4x4x16xf32> to vector<1x4x16xf32>
    %cst_9 = arith.constant 0.285714298 : f32
    %26 = vector.broadcast %cst_9 : f32 to vector<1x4x16xf32>
    %27 = arith.mulf %26, %25 : vector<1x4x16xf32>
    %28 = vector.extract_strided_slice %1 {offsets = [2, 0, 0], sizes = [1, 4, 16], strides = [1, 1, 1]} : vector<4x4x16xf32> to vector<1x4x16xf32>
    %cst_10 = arith.constant 0.714285731 : f32
    %29 = vector.broadcast %cst_10 : f32 to vector<1x4x16xf32>
    %30 = arith.mulf %29, %28 : vector<1x4x16xf32>
    %31 = arith.addf %27, %30 : vector<1x4x16xf32>
    %32 = vector.extract_strided_slice %1 {offsets = [2, 0, 0], sizes = [1, 4, 16], strides = [1, 1, 1]} : vector<4x4x16xf32> to vector<1x4x16xf32>
    %cst_11 = arith.constant 0.857142865 : f32
    %33 = vector.broadcast %cst_11 : f32 to vector<1x4x16xf32>
    %34 = arith.mulf %33, %32 : vector<1x4x16xf32>
    %35 = vector.extract_strided_slice %1 {offsets = [3, 0, 0], sizes = [1, 4, 16], strides = [1, 1, 1]} : vector<4x4x16xf32> to vector<1x4x16xf32>
    %cst_12 = arith.constant 0.142857149 : f32
    %36 = vector.broadcast %cst_12 : f32 to vector<1x4x16xf32>
    %37 = arith.mulf %36, %35 : vector<1x4x16xf32>
    %38 = arith.addf %34, %37 : vector<1x4x16xf32>
    %39 = vector.extract_strided_slice %1 {offsets = [2, 0, 0], sizes = [1, 4, 16], strides = [1, 1, 1]} : vector<4x4x16xf32> to vector<1x4x16xf32>
    %cst_13 = arith.constant 0.428571433 : f32
    %40 = vector.broadcast %cst_13 : f32 to vector<1x4x16xf32>
    %41 = arith.mulf %40, %39 : vector<1x4x16xf32>
    %42 = vector.extract_strided_slice %1 {offsets = [3, 0, 0], sizes = [1, 4, 16], strides = [1, 1, 1]} : vector<4x4x16xf32> to vector<1x4x16xf32>
    %cst_14 = arith.constant 0.571428597 : f32
    %43 = vector.broadcast %cst_14 : f32 to vector<1x4x16xf32>
    %44 = arith.mulf %43, %42 : vector<1x4x16xf32>
    %45 = arith.addf %41, %44 : vector<1x4x16xf32>
    %46 = vector.extract_strided_slice %1 {offsets = [3, 0, 0], sizes = [1, 4, 16], strides = [1, 1, 1]} : vector<4x4x16xf32> to vector<1x4x16xf32>
    %47 = tpu.concatenate %2, %3, %10, %17, %24, %31, %38, %45, %46, %2 in 0 : vector<1x4x16xf32>, vector<1x4x16xf32>, vector<1x4x16xf32>, vector<1x4x16xf32>, vector<1x4x16xf32>, vector<1x4x16xf32>, vector<1x4x16xf32>, vector<1x4x16xf32>, vector<1x4x16xf32>, vector<1x4x16xf32> -> vector<10x4x16xf32>
    %cst_15 = arith.constant 0.000000e+00 : f32
    %48 = vector.broadcast %cst_15 : f32 to vector<10x1x16xf32>
    %49 = vector.extract_strided_slice %47 {offsets = [0, 0, 0], sizes = [10, 1, 16], strides = [1, 1, 1]} : vector<10x4x16xf32> to vector<10x1x16xf32>
    %50 = vector.extract_strided_slice %47 {offsets = [0, 0, 0], sizes = [10, 1, 16], strides = [1, 1, 1]} : vector<10x4x16xf32> to vector<10x1x16xf32>
    %cst_16 = arith.constant 0.571428597 : f32
    %51 = vector.broadcast %cst_16 : f32 to vector<10x1x16xf32>
    %52 = arith.mulf %51, %50 : vector<10x1x16xf32>
    %53 = vector.extract_strided_slice %47 {offsets = [0, 1, 0], sizes = [10, 1, 16], strides = [1, 1, 1]} : vector<10x4x16xf32> to vector<10x1x16xf32>
    %cst_17 = arith.constant 0.428571433 : f32
    %54 = vector.broadcast %cst_17 : f32 to vector<10x1x16xf32>
    %55 = arith.mulf %54, %53 : vector<10x1x16xf32>
    %56 = arith.addf %52, %55 : vector<10x1x16xf32>
    %57 = vector.extract_strided_slice %47 {offsets = [0, 0, 0], sizes = [10, 1, 16], strides = [1, 1, 1]} : vector<10x4x16xf32> to vector<10x1x16xf32>
    %cst_18 = arith.constant 0.142857149 : f32
    %58 = vector.broadcast %cst_18 : f32 to vector<10x1x16xf32>
    %59 = arith.mulf %58, %57 : vector<10x1x16xf32>
    %60 = vector.extract_strided_slice %47 {offsets = [0, 1, 0], sizes = [10, 1, 16], strides = [1, 1, 1]} : vector<10x4x16xf32> to vector<10x1x16xf32>
    %cst_19 = arith.constant 0.857142865 : f32
    %61 = vector.broadcast %cst_19 : f32 to vector<10x1x16xf32>
    %62 = arith.mulf %61, %60 : vector<10x1x16xf32>
    %63 = arith.addf %59, %62 : vector<10x1x16xf32>
    %64 = vector.extract_strided_slice %47 {offsets = [0, 1, 0], sizes = [10, 1, 16], strides = [1, 1, 1]} : vector<10x4x16xf32> to vector<10x1x16xf32>
    %cst_20 = arith.constant 0.714285731 : f32
    %65 = vector.broadcast %cst_20 : f32 to vector<10x1x16xf32>
    %66 = arith.mulf %65, %64 : vector<10x1x16xf32>
    %67 = vector.extract_strided_slice %47 {offsets = [0, 2, 0], sizes = [10, 1, 16], strides = [1, 1, 1]} : vector<10x4x16xf32> to vector<10x1x16xf32>
    %cst_21 = arith.constant 0.285714298 : f32
    %68 = vector.broadcast %cst_21 : f32 to vector<10x1x16xf32>
    %69 = arith.mulf %68, %67 : vector<10x1x16xf32>
    %70 = arith.addf %66, %69 : vector<10x1x16xf32>
    %71 = vector.extract_strided_slice %47 {offsets = [0, 1, 0], sizes = [10, 1, 16], strides = [1, 1, 1]} : vector<10x4x16xf32> to vector<10x1x16xf32>
    %cst_22 = arith.constant 0.285714298 : f32
    %72 = vector.broadcast %cst_22 : f32 to vector<10x1x16xf32>
    %73 = arith.mulf %72, %71 : vector<10x1x16xf32>
    %74 = vector.extract_strided_slice %47 {offsets = [0, 2, 0], sizes = [10, 1, 16], strides = [1, 1, 1]} : vector<10x4x16xf32> to vector<10x1x16xf32>
    %cst_23 = arith.constant 0.714285731 : f32
    %75 = vector.broadcast %cst_23 : f32 to vector<10x1x16xf32>
    %76 = arith.mulf %75, %74 : vector<10x1x16xf32>
    %77 = arith.addf %73, %76 : vector<10x1x16xf32>
    %78 = vector.extract_strided_slice %47 {offsets = [0, 2, 0], sizes = [10, 1, 16], strides = [1, 1, 1]} : vector<10x4x16xf32> to vector<10x1x16xf32>
    %cst_24 = arith.constant 0.857142865 : f32
    %79 = vector.broadcast %cst_24 : f32 to vector<10x1x16xf32>
    %80 = arith.mulf %79, %78 : vector<10x1x16xf32>
    %81 = vector.extract_strided_slice %47 {offsets = [0, 3, 0], sizes = [10, 1, 16], strides = [1, 1, 1]} : vector<10x4x16xf32> to vector<10x1x16xf32>
    %cst_25 = arith.constant 0.142857149 : f32
    %82 = vector.broadcast %cst_25 : f32 to vector<10x1x16xf32>
    %83 = arith.mulf %82, %81 : vector<10x1x16xf32>
    %84 = arith.addf %80, %83 : vector<10x1x16xf32>
    %85 = vector.extract_strided_slice %47 {offsets = [0, 2, 0], sizes = [10, 1, 16], strides = [1, 1, 1]} : vector<10x4x16xf32> to vector<10x1x16xf32>
    %cst_26 = arith.constant 0.428571433 : f32
    %86 = vector.broadcast %cst_26 : f32 to vector<10x1x16xf32>
    %87 = arith.mulf %86, %85 : vector<10x1x16xf32>
    %88 = vector.extract_strided_slice %47 {offsets = [0, 3, 0], sizes = [10, 1, 16], strides = [1, 1, 1]} : vector<10x4x16xf32> to vector<10x1x16xf32>
    %cst_27 = arith.constant 0.571428597 : f32
    %89 = vector.broadcast %cst_27 : f32 to vector<10x1x16xf32>
    %90 = arith.mulf %89, %88 : vector<10x1x16xf32>
    %91 = arith.addf %87, %90 : vector<10x1x16xf32>
    %92 = vector.extract_strided_slice %47 {offsets = [0, 3, 0], sizes = [10, 1, 16], strides = [1, 1, 1]} : vector<10x4x16xf32> to vector<10x1x16xf32>
    %93 = tpu.concatenate %48, %49, %56, %63, %70, %77, %84, %91, %92, %48 in 1 : vector<10x1x16xf32>, vector<10x1x16xf32>, vector<10x1x16xf32>, vector<10x1x16xf32>, vector<10x1x16xf32>, vector<10x1x16xf32>, vector<10x1x16xf32>, vector<10x1x16xf32>, vector<10x1x16xf32>, vector<10x1x16xf32> -> vector<10x10x16xf32>
    %cst_28 = arith.constant 0.000000e+00 : f32
    %94 = vector.broadcast %cst_28 : f32 to vector<64x8xf32>
    %95 = arith.truncf %93 : vector<10x10x16xf32> to vector<10x10x16xbf16>
    %96 = vector.extract_strided_slice %95 {offsets = [0, 0, 0], sizes = [8, 8, 16], strides = [1, 1, 1]} : vector<10x10x16xbf16> to vector<8x8x16xbf16>
    %97 = vector.extract_strided_slice %95 {offsets = [0, 1, 0], sizes = [8, 8, 16], strides = [1, 1, 1]} : vector<10x10x16xbf16> to vector<8x8x16xbf16>
    %98 = vector.extract_strided_slice %95 {offsets = [0, 2, 0], sizes = [8, 8, 16], strides = [1, 1, 1]} : vector<10x10x16xbf16> to vector<8x8x16xbf16>
    %99 = tpu.concatenate %96, %97, %98 in 2 : vector<8x8x16xbf16>, vector<8x8x16xbf16>, vector<8x8x16xbf16> -> vector<8x8x48xbf16>
    %100 = vector.shape_cast %99 : vector<8x8x48xbf16> to vector<64x48xbf16>
    %c0_29 = arith.constant 0 : index
    %c0_30 = arith.constant 0 : index
    %c0_31 = arith.constant 0 : index
    %101 = vector.load %arg2[%c0_29, %c0_30, %c0_31] : memref<3x48x8xbf16, #tpu.memory_space<vmem>>, vector<1x48x8xbf16>
    %102 = vector.shape_cast %101 : vector<1x48x8xbf16> to vector<48x8xbf16>
    %cst_32 = arith.constant dense<0.000000e+00> : vector<64x8xf32>
    %103 = tpu.matmul %100, %102, %cst_32 {dimension_numbers = #tpu.dot_dimension_numbers<[1], [0], [0], [1], [0, 0, 1, 1], [], []>} : vector<64x48xbf16>, vector<48x8xbf16>, vector<64x8xf32> -> vector<64x8xf32>
    %104 = arith.addf %94, %103 : vector<64x8xf32>
    %105 = vector.extract_strided_slice %95 {offsets = [1, 0, 0], sizes = [8, 8, 16], strides = [1, 1, 1]} : vector<10x10x16xbf16> to vector<8x8x16xbf16>
    %106 = vector.extract_strided_slice %95 {offsets = [1, 1, 0], sizes = [8, 8, 16], strides = [1, 1, 1]} : vector<10x10x16xbf16> to vector<8x8x16xbf16>
    %107 = vector.extract_strided_slice %95 {offsets = [1, 2, 0], sizes = [8, 8, 16], strides = [1, 1, 1]} : vector<10x10x16xbf16> to vector<8x8x16xbf16>
    %108 = tpu.concatenate %105, %106, %107 in 2 : vector<8x8x16xbf16>, vector<8x8x16xbf16>, vector<8x8x16xbf16> -> vector<8x8x48xbf16>
    %109 = vector.shape_cast %108 : vector<8x8x48xbf16> to vector<64x48xbf16>
    %c1 = arith.constant 1 : index
    %c0_33 = arith.constant 0 : index
    %c0_34 = arith.constant 0 : index
    %110 = vector.load %arg2[%c1, %c0_33, %c0_34] : memref<3x48x8xbf16, #tpu.memory_space<vmem>>, vector<1x48x8xbf16>
    %111 = vector.shape_cast %110 : vector<1x48x8xbf16> to vector<48x8xbf16>
    %cst_35 = arith.constant dense<0.000000e+00> : vector<64x8xf32>
    %112 = tpu.matmul %109, %111, %cst_35 {dimension_numbers = #tpu.dot_dimension_numbers<[1], [0], [0], [1], [0, 0, 1, 1], [], []>} : vector<64x48xbf16>, vector<48x8xbf16>, vector<64x8xf32> -> vector<64x8xf32>
    %113 = arith.addf %104, %112 : vector<64x8xf32>
    %114 = vector.extract_strided_slice %95 {offsets = [2, 0, 0], sizes = [8, 8, 16], strides = [1, 1, 1]} : vector<10x10x16xbf16> to vector<8x8x16xbf16>
    %115 = vector.extract_strided_slice %95 {offsets = [2, 1, 0], sizes = [8, 8, 16], strides = [1, 1, 1]} : vector<10x10x16xbf16> to vector<8x8x16xbf16>
    %116 = vector.extract_strided_slice %95 {offsets = [2, 2, 0], sizes = [8, 8, 16], strides = [1, 1, 1]} : vector<10x10x16xbf16> to vector<8x8x16xbf16>
    %117 = tpu.concatenate %114, %115, %116 in 2 : vector<8x8x16xbf16>, vector<8x8x16xbf16>, vector<8x8x16xbf16> -> vector<8x8x48xbf16>
    %118 = vector.shape_cast %117 : vector<8x8x48xbf16> to vector<64x48xbf16>
    %c2 = arith.constant 2 : index
    %c0_36 = arith.constant 0 : index
    %c0_37 = arith.constant 0 : index
    %119 = vector.load %arg2[%c2, %c0_36, %c0_37] : memref<3x48x8xbf16, #tpu.memory_space<vmem>>, vector<1x48x8xbf16>
    %120 = vector.shape_cast %119 : vector<1x48x8xbf16> to vector<48x8xbf16>
    %cst_38 = arith.constant dense<0.000000e+00> : vector<64x8xf32>
    %121 = tpu.matmul %118, %120, %cst_38 {dimension_numbers = #tpu.dot_dimension_numbers<[1], [0], [0], [1], [0, 0, 1, 1], [], []>} : vector<64x48xbf16>, vector<48x8xbf16>, vector<64x8xf32> -> vector<64x8xf32>
    %122 = arith.addf %113, %121 : vector<64x8xf32>
    %c0_39 = arith.constant 0 : index
    %c0_40 = arith.constant 0 : index
    %123 = vector.load %arg3[%c0_39, %c0_40] : memref<1x8xf32, #tpu.memory_space<vmem>>, vector<1x8xf32>
    %124 = vector.broadcast %123 : vector<1x8xf32> to vector<64x8xf32>
    %125 = arith.addf %122, %124 : vector<64x8xf32>
    %126 = vector.shape_cast %125 : vector<64x8xf32> to vector<1x8x8x8xf32>
    %c0_41 = arith.constant 0 : index
    %c0_42 = arith.constant 0 : index
    %c0_43 = arith.constant 0 : index
    %c0_44 = arith.constant 0 : index
    %127 = vector.load %arg4[%c0_41, %c0_42, %c0_43, %c0_44] : memref<1x8x8x8xf32, #tpu.memory_space<vmem>>, vector<1x8x8x8xf32>
    tpu.vector_store %arg4[%c0_41, %c0_42, %c0_43, %c0_44], %126 {strides = array<i32>} : memref<1x8x8x8xf32, #tpu.memory_space<vmem>>, vector<1x8x8x8xf32>,
    return
  }
  func.func @transform_0(%arg0: i32) -> (i32, i32, i32, i32) {
    %c0_i32 = arith.constant 0 : i32
    %c0_i32_0 = arith.constant 0 : i32
    %c0_i32_1 = arith.constant 0 : i32
    %c0_i32_2 = arith.constant 0 : i32
    return %arg0, %c0_i32, %c0_i32_0, %c0_i32_1 : i32, i32, i32, i32
  }
  func.func @transform_1(%arg0: i32) -> (i32, i32, i32) {
    %c0_i32 = arith.constant 0 : i32
    %c0_i32_0 = arith.constant 0 : i32
    %c0_i32_1 = arith.constant 0 : i32
    %c0_i32_2 = arith.constant 0 : i32
    return %c0_i32, %c0_i32_0, %c0_i32_1 : i32, i32, i32
  }
  func.func @transform_2(%arg0: i32) -> (i32, i32) {
    %c0_i32 = arith.constant 0 : i32
    %c0_i32_0 = arith.constant 0 : i32
    %c0_i32_1 = arith.constant 0 : i32
    return %c0_i32, %c0_i32_0 : i32, i32
  }
  func.func @transform_3(%arg0: i32) -> (i32, i32, i32, i32) {
    %c0_i32 = arith.constant 0 : i32
    %c0_i32_0 = arith.constant 0 : i32
    %c0_i32_1 = arith.constant 0 : i32
    %c0_i32_2 = arith.constant 0 : i32
    return %arg0, %c0_i32, %c0_i32_0, %c0_i32_1 : i32, i32, i32, i32
  }
}

</mosaic_0001>

<llo_original>
// kernel: tpu_custom_call.1
$region0: #{tpu_custom_call.1}
  #allocation0 [shape = 'u32[]', space=smem, size = 0x4, offset = 0x4, fixed_abs, tag = 'smem constant byte address 0x4 - core index']
  #allocation1 [shape = 'u32[144,128]{1,0:T(1,128)}', space=vmem, size = 0x12000, scoped, tag = 'internal scratch']
  %s0 = inlined_call_operand.vmem [shape: f32[2,4,4,16], index: 0, kind: input, shape index: {}]
  %s1 = inlined_call_operand.vmem [shape: bf16[3,48,8], index: 1, kind: input, shape index: {}]
  %s2 = inlined_call_operand.vmem [shape: f32[1,8], index: 2, kind: input, shape index: {}]
  %s3 = inlined_call_operand.hbm [shape: f32[2,8,8,8], index: 3, kind: output, shape index: {}]
  %s4 = sld [smem:[#allocation0]]
  $region45: #{tpu_custom_call.1} parent=0
    _
  %s6 = ssub.s32 1, %s4
  %s7 = scalar_select 0, %s6, %s4
  $region1: #{tpu_custom_call.1} parent=0
    #allocation2 [shape = 'u8[65536]{0}', space=vmem, size = 0x10000, scoped, tag = 'output window, operand 0']
    #allocation3 [shape = 's32[2]{0}', space=sflag, size = 0x8, scoped, tag = 'scoped memory for tpu_custom_call.1']
    %8 = vsyncpa [#allocation3], 0
    %s9 = scalar_lea.sflag [#allocation3], 1
    %10 = vsyncpa %s9, 0
    loop: start=0, step=1, limit=4
    $region2: #{tpu_custom_call.1} parent=1 // loop_pre_header
      _
    $region3: #{tpu_custom_call.1} parent=1 // loop_header
      %s12 = sphi 0, %s16
      %p13 = scmp.ge.s32.totalorder %s12, 4
      %s22 = sphi 0, %s24
      %s25 = sphi 0, %s22
      %s26 = sphi 0, %s25
      %s42 = sphi 0, %s26
      %s46 = sphi 0, %s46
      %s48 = sphi 0, %s46
      %s49 = sphi 0, %s48
      %s63 = sphi 0, %s49
      %s67 = sphi 0, %s67
      %s69 = sphi 0, %s67
      %s70 = sphi 0, %s69
      %s84 = sphi 0, %s70
      %s90 = sphi 0, %s92
      %s93 = sphi 0, %s90
      %s94 = sphi 0, %s93
      %s110 = sphi 0, %s94
    $region4: #{tpu_custom_call.1} parent=1 // loop_header_branch
      %15 = sbr.rel (%p13) target = $region8
    $region5: #{tpu_custom_call.1} parent=1 // loop_body
      %s17 = ssub.s32 %s12, 1
      %s18 = ssub.s32 %s12, 2
      %s19 = sadd.s32 %s12, 1
      %s20 = ssub.s32 %s12, %s19
      %p21 = scmp.eq.s32.totalorder %s20, 0
      %s23 = sadd.s32 %s22, 1
      %s24 = scalar_select %p21, %s22, %s23
      %p27 = pneg %p21
      %p28 = scmp.eq.s32.totalorder %s12, 1
      %p29 = por %p27, %p28
      %p30 = scmp.ne.s32.totalorder %s22, %s25
      %p31 = scmp.eq.s32.totalorder %s12, 0
      %p32 = por %p30, %p31
      %p33 = scmp.ne.s32.totalorder %s22, %s25
      %p34 = scmp.eq.s32.totalorder %s17, 1
      %p35 = por %p33, %p34
      %p36 = scmp.ne.s32.totalorder %s25, %s26
      %p37 = scmp.eq.s32.totalorder %s17, 0
      %p38 = por %p36, %p37
      %p39 = scmp.ne.s32.totalorder %s25, %s26
      %p40 = scmp.eq.s32.totalorder %s18, 1
      %p41 = por %p39, %p40
      %p43 = scmp.ne.s32.totalorder %s26, %s42
      %p44 = scmp.eq.s32.totalorder %s18, 0
      %p45 = por %p43, %p44
      %s47 = sadd.s32 %s46, 1
      %p50 = scmp.eq.s32.totalorder %s12, 1
      %p51 = scmp.ne.s32.totalorder %s46, %s48
      %p52 = scmp.eq.s32.totalorder %s12, 0
      %p53 = por %p51, %p52
      %p54 = scmp.ne.s32.totalorder %s46, %s48
      %p55 = scmp.eq.s32.totalorder %s17, 1
      %p56 = por %p54, %p55
      %p57 = scmp.ne.s32.totalorder %s48, %s49
      %p58 = scmp.eq.s32.totalorder %s17, 0
      %p59 = por %p57, %p58
      %p60 = scmp.ne.s32.totalorder %s48, %s49
      %p61 = scmp.eq.s32.totalorder %s18, 1
      %p62 = por %p60, %p61
      %p64 = scmp.ne.s32.totalorder %s49, %s63
      %p65 = scmp.eq.s32.totalorder %s18, 0
      %p66 = por %p64, %p65
      %s68 = sadd.s32 %s67, 1
      %p71 = scmp.eq.s32.totalorder %s12, 1
      %p72 = scmp.ne.s32.totalorder %s67, %s69
      %p73 = scmp.eq.s32.totalorder %s12, 0
      %p74 = por %p72, %p73
      %p75 = scmp.ne.s32.totalorder %s67, %s69
      %p76 = scmp.eq.s32.totalorder %s17, 1
      %p77 = por %p75, %p76
      %p78 = scmp.ne.s32.totalorder %s69, %s70
      %p79 = scmp.eq.s32.totalorder %s17, 0
      %p80 = por %p78, %p79
      %p81 = scmp.ne.s32.totalorder %s69, %s70
      %p82 = scmp.eq.s32.totalorder %s18, 1
      %p83 = por %p81, %p82
      %p85 = scmp.ne.s32.totalorder %s70, %s84
      %p86 = scmp.eq.s32.totalorder %s18, 0
      %p87 = por %p85, %p86
      %s88 = ssub.s32 %s12, %s19
      %p89 = scmp.eq.s32.totalorder %s88, 0
      %s91 = sadd.s32 %s90, 1
      %s92 = scalar_select %p89, %s90, %s91
      %p95 = pneg %p89
      %p96 = scmp.eq.s32.totalorder %s12, 1
      %p97 = por %p95, %p96
      %p98 = scmp.ne.s32.totalorder %s90, %s93
      %p99 = scmp.eq.s32.totalorder %s12, 0
      %p100 = por %p98, %p99
      %p101 = scmp.ne.s32.totalorder %s90, %s93
      %p102 = scmp.eq.s32.totalorder %s17, 1
      %p103 = por %p101, %p102
      %p104 = scmp.ne.s32.totalorder %s93, %s94
      %p105 = scmp.eq.s32.totalorder %s17, 0
      %p106 = por %p104, %p105
      %p107 = scmp.ne.s32.totalorder %s93, %s94
      %p108 = scmp.eq.s32.totalorder %s18, 1
      %p109 = por %p107, %p108
      %p111 = scmp.ne.s32.totalorder %s94, %s110
      %p112 = scmp.eq.s32.totalorder %s18, 0
      %p113 = por %p111, %p112
      %p114 = scmp.le.s32.totalorder 1, %s12
      %p115 = scmp.lt.s32.totalorder %s12, 3
      %p116 = pnand %p114, %p115
      %p117 = pneg %p116
      // Predicated region
      $region9: #{tpu_custom_call.1} parent=5 // pred_check
        _
      $region10: #{tpu_custom_call.1} parent=5 // pred_check_branch
        %119 = sbr.rel (%p116) target = $region12
      $region11: #{tpu_custom_call.1} parent=5 // pred_region
        %s120 = ssub.s32 %s12, 1
        // Predicated region
        $region13: #{tpu_custom_call.1} parent=11 // pred_check
          %p121 = pneg %p59
        $region14: #{tpu_custom_call.1} parent=11 // pred_check_branch
          %123 = sbr.rel (%p121) target = $region16
        $region15: #{tpu_custom_call.1} parent=11 // pred_region
          _
        $region16: #{tpu_custom_call.1} parent=11 // pred_fallthru
          _
        // Predicated region
        $region17: #{tpu_custom_call.1} parent=11 // pred_check
          %p124 = pneg %p80
        $region18: #{tpu_custom_call.1} parent=11 // pred_check_branch
          %126 = sbr.rel (%p124) target = $region20
        $region19: #{tpu_custom_call.1} parent=11 // pred_region
          _
        $region20: #{tpu_custom_call.1} parent=11 // pred_fallthru
          _
      $region12: #{tpu_custom_call.1} parent=5 // pred_fallthru
        _
      %p127 = scmp.lt.s32.totalorder %s12, 2
      // Predicated region
      $region21: #{tpu_custom_call.1} parent=5 // pred_check
        %p128 = pneg %p127
      $region22: #{tpu_custom_call.1} parent=5 // pred_check_branch
        %130 = sbr.rel (%p128) target = $region24
      $region23: #{tpu_custom_call.1} parent=5 // pred_region
        // Predicated region
        $region25: #{tpu_custom_call.1} parent=23 // pred_check
          %p131 = pneg %p32
        $region26: #{tpu_custom_call.1} parent=23 // pred_check_branch
          %133 = sbr.rel (%p131) target = $region28
        $region27: #{tpu_custom_call.1} parent=23 // pred_region
          %p134 = scmp.lt.s32.totalorder %s12, 1
          %s135 = scalar_select %p134, %s12, 1
          %s136 = smul.addr %s135, 4
          %s137 = smul.addr %s136, 4
          %s138 = scalar_lea.vmem %s0, %s137
        $region28: #{tpu_custom_call.1} parent=23 // pred_fallthru
          _
      $region24: #{tpu_custom_call.1} parent=5 // pred_fallthru
        _
      %p139 = scmp.le.s32.totalorder 1, %s12
      %p140 = scmp.lt.s32.totalorder %s12, 3
      %p141 = pnand %p139, %p140
      %p142 = pneg %p141
      // Predicated region
      $region29: #{tpu_custom_call.1} parent=5 // pred_check
        _
      $region30: #{tpu_custom_call.1} parent=5 // pred_check_branch
        %144 = sbr.rel (%p141) target = $region32
      $region31: #{tpu_custom_call.1} parent=5 // pred_region
        %s145 = ssub.s32 %s12, 1
        %p146 = scmp.lt.s32.totalorder %s17, 1
        %s147 = scalar_select %p146, %s17, 1
        %s148 = smul.addr %s147, 4
        %s149 = smul.addr %s148, 4
        %s150 = scalar_lea.vmem %s0, %s149
        %p151 = pneg %p38
        %p152 = pneg %p35
        %p153 = pneg %p59
        %p154 = pneg %p56
        %p155 = pneg %p80
        %p156 = pneg %p77
        %p157 = pneg %p106
        %p158 = pneg %p103
        %s159 = sand.u32 %s93, 1
        %s160 = scalar_lea.sflag [#allocation3], %s159
        %s161 = sand.u32 %s93, 1
        %s162 = smul.addr %s161, 64
        %s163 = scalar_lea.vmem [#allocation2], %s162
        %p164 = scmp.lt.s32.totalorder %s17, 1
        %s165 = scalar_select %p164, %s17, 1
        %s166 = smul.addr %s165, 4
        %s167 = smul.addr %s166, 4
        %s168 = scalar_lea.vmem %s0, %s167
        %v170 = vld [vmem:[%s168] sm:$0xf]
        %v171 = vld [vmem:[%s168 + $0x4] sm:$0xf]
        %v172 = vld [vmem:[%s168 + $0x8] sm:$0xf]
        %v173 = vld [vmem:[%s168 + $0xc] sm:$0xf]
        %v174 = vmul.f32 %v170, 0.5714286
        %v175 = vmul.f32 %v171, 0.42857143
        %v176 = vadd.f32 %v174, %v175
        %v177 = vmul.f32 %v170, 0.14285715
        %v178 = vmul.f32 %v171, 0.85714287
        %v179 = vadd.f32 %v177, %v178
        %v180 = vmul.f32 %v171, 0.71428573
        %v181 = vmul.f32 %v172, 0.2857143
        %v182 = vadd.f32 %v180, %v181
        %v183 = vmul.f32 %v171, 0.2857143
        %v184 = vmul.f32 %v172, 0.71428573
        %v185 = vadd.f32 %v183, %v184
        %v186 = vmul.f32 %v172, 0.85714287
        %v187 = vmul.f32 %v173, 0.14285715
        %v188 = vadd.f32 %v186, %v187
        %v189 = vmul.f32 %v172, 0.42857143
        %v190 = vmul.f32 %v173, 0.5714286
        %v191 = vadd.f32 %v189, %v190
        %v192 = vmul.f32 %v176, 0.5714286
        %v193 = vmul.f32 %v179, 0.5714286
        %v194 = vmul.f32 %v182, 0.5714286
        %v195 = vmul.f32 %v185, 0.5714286
        %v196 = vmul.f32 %v188, 0.5714286
        %v197 = vmul.f32 %v191, 0.5714286
        %v198 = vmul.f32 %v170, 0.42857143
        %v199 = vmul.f32 %v176, 0.42857143
        %v200 = vmul.f32 %v179, 0.42857143
        %v201 = vmul.f32 %v182, 0.42857143
        %v202 = vmul.f32 %v185, 0.42857143
        %v203 = vmul.f32 %v188, 0.42857143
        %v204 = vmul.f32 %v191, 0.42857143
        %v205 = vmul.f32 %v173, 0.42857143
        %v215 = vrot.slane 0.0, 1
        %v216 = vrot.slane %v198, 1
        %v217 = vrot.slane %v199, 1
        %v218 = vrot.slane %v200, 1
        %v219 = vrot.slane %v201, 1
        %v220 = vrot.slane %v202, 1
        %v221 = vrot.slane %v203, 1
        %v222 = vrot.slane %v204, 1
        %v223 = vrot.slane %v205, 1
        %v233 = vadd.f32 %v215, 0.0
        %v234 = vadd.f32 %v174, %v216
        %v235 = vadd.f32 %v192, %v217
        %v236 = vadd.f32 %v193, %v218
        %v237 = vadd.f32 %v194, %v219
        %v238 = vadd.f32 %v195, %v220
        %v239 = vadd.f32 %v196, %v221
        %v240 = vadd.f32 %v197, %v222
        %v241 = vadd.f32 %v190, %v223
        %v242 = vmul.f32 %v176, 0.14285715
        %v243 = vmul.f32 %v179, 0.14285715
        %v244 = vmul.f32 %v182, 0.14285715
        %v245 = vmul.f32 %v185, 0.14285715
        %v246 = vmul.f32 %v188, 0.14285715
        %v247 = vmul.f32 %v191, 0.14285715
        %v248 = vmul.f32 %v170, 0.85714287
        %v249 = vmul.f32 %v176, 0.85714287
        %v250 = vmul.f32 %v179, 0.85714287
        %v251 = vmul.f32 %v182, 0.85714287
        %v252 = vmul.f32 %v185, 0.85714287
        %v253 = vmul.f32 %v188, 0.85714287
        %v254 = vmul.f32 %v191, 0.85714287
        %v255 = vmul.f32 %v173, 0.85714287
        %v264 = vrot.slane %v248, 1
        %v265 = vrot.slane %v249, 1
        %v266 = vrot.slane %v250, 1
        %v267 = vrot.slane %v251, 1
        %v268 = vrot.slane %v252, 1
        %v269 = vrot.slane %v253, 1
        %v270 = vrot.slane %v254, 1
        %v271 = vrot.slane %v255, 1
        %v280 = vadd.f32 %v177, %v264
        %v281 = vadd.f32 %v242, %v265
        %v282 = vadd.f32 %v243, %v266
        %v283 = vadd.f32 %v244, %v267
        %v284 = vadd.f32 %v245, %v268
        %v285 = vadd.f32 %v246, %v269
        %v286 = vadd.f32 %v247, %v270
        %v287 = vadd.f32 %v187, %v271
        %v288 = vmul.f32 %v170, 0.71428573
        %v289 = vmul.f32 %v176, 0.71428573
        %v290 = vmul.f32 %v179, 0.71428573
        %v291 = vmul.f32 %v182, 0.71428573
        %v292 = vmul.f32 %v185, 0.71428573
        %v293 = vmul.f32 %v188, 0.71428573
        %v294 = vmul.f32 %v191, 0.71428573
        %v295 = vmul.f32 %v173, 0.71428573
        %v296 = vmul.f32 %v170, 0.2857143
        %v297 = vmul.f32 %v176, 0.2857143
        %v298 = vmul.f32 %v179, 0.2857143
        %v299 = vmul.f32 %v182, 0.2857143
        %v300 = vmul.f32 %v185, 0.2857143
        %v301 = vmul.f32 %v188, 0.2857143
        %v302 = vmul.f32 %v191, 0.2857143
        %v303 = vmul.f32 %v173, 0.2857143
        %v312 = vrot.slane %v296, 1
        %v313 = vrot.slane %v297, 1
        %v314 = vrot.slane %v298, 1
        %v315 = vrot.slane %v299, 1
        %v316 = vrot.slane %v300, 1
        %v317 = vrot.slane %v301, 1
        %v318 = vrot.slane %v302, 1
        %v319 = vrot.slane %v303, 1
        %v328 = vadd.f32 %v288, %v312
        %v329 = vadd.f32 %v289, %v313
        %v330 = vadd.f32 %v290, %v314
        %v331 = vadd.f32 %v291, %v315
        %v332 = vadd.f32 %v292, %v316
        %v333 = vadd.f32 %v293, %v317
        %v334 = vadd.f32 %v294, %v318
        %v335 = vadd.f32 %v295, %v319
        %v344 = vrot.slane %v288, 1
        %v345 = vrot.slane %v289, 1
        %v346 = vrot.slane %v290, 1
        %v347 = vrot.slane %v291, 1
        %v348 = vrot.slane %v292, 1
        %v349 = vrot.slane %v293, 1
        %v350 = vrot.slane %v294, 1
        %v351 = vrot.slane %v295, 1
        %v360 = vadd.f32 %v296, %v344
        %v361 = vadd.f32 %v297, %v345
        %v362 = vadd.f32 %v298, %v346
        %v363 = vadd.f32 %v299, %v347
        %v364 = vadd.f32 %v300, %v348
        %v365 = vadd.f32 %v301, %v349
        %v366 = vadd.f32 %v302, %v350
        %v367 = vadd.f32 %v303, %v351
        %v376 = vrot.slane %v177, 1
        %v377 = vrot.slane %v242, 1
        %v378 = vrot.slane %v243, 1
        %v379 = vrot.slane %v244, 1
        %v380 = vrot.slane %v245, 1
        %v381 = vrot.slane %v246, 1
        %v382 = vrot.slane %v247, 1
        %v383 = vrot.slane %v187, 1
        %v392 = vadd.f32 %v248, %v376
        %v393 = vadd.f32 %v249, %v377
        %v394 = vadd.f32 %v250, %v378
        %v395 = vadd.f32 %v251, %v379
        %v396 = vadd.f32 %v252, %v380
        %v397 = vadd.f32 %v253, %v381
        %v398 = vadd.f32 %v254, %v382
        %v399 = vadd.f32 %v255, %v383
        %v408 = vrot.slane %v174, 1
        %v409 = vrot.slane %v192, 1
        %v410 = vrot.slane %v193, 1
        %v411 = vrot.slane %v194, 1
        %v412 = vrot.slane %v195, 1
        %v413 = vrot.slane %v196, 1
        %v414 = vrot.slane %v197, 1
        %v415 = vrot.slane %v190, 1
        %v424 = vadd.f32 %v198, %v408
        %v425 = vadd.f32 %v199, %v409
        %v426 = vadd.f32 %v200, %v410
        %v427 = vadd.f32 %v201, %v411
        %v428 = vadd.f32 %v202, %v412
        %v429 = vadd.f32 %v203, %v413
        %v430 = vadd.f32 %v204, %v414
        %v431 = vadd.f32 %v205, %v415
        %v440 = vrot.slane 0.0, 7
        %v441 = vrot.slane %v170, 7
        %v442 = vrot.slane %v176, 7
        %v443 = vrot.slane %v179, 7
        %v444 = vrot.slane %v182, 7
        %v445 = vrot.slane %v185, 7
        %v446 = vrot.slane %v188, 7
        %v447 = vrot.slane %v191, 7
        %v448 = vrot.slane %v173, 7
        %v467 = vrot.slane %v233, 6
        %v468 = vrot.slane %v234, 6
        %v469 = vrot.slane %v235, 6
        %v470 = vrot.slane %v236, 6
        %v471 = vrot.slane %v237, 6
        %v472 = vrot.slane %v238, 6
        %v473 = vrot.slane %v239, 6
        %v474 = vrot.slane %v240, 6
        %v475 = vrot.slane %v241, 6
        %v493 = vrot.slane %v233, 5
        %v494 = vrot.slane %v280, 5
        %v495 = vrot.slane %v281, 5
        %v496 = vrot.slane %v282, 5
        %v497 = vrot.slane %v283, 5
        %v498 = vrot.slane %v284, 5
        %v499 = vrot.slane %v285, 5
        %v500 = vrot.slane %v286, 5
        %v501 = vrot.slane %v287, 5
        %v519 = vrot.slane %v328, 5
        %v520 = vrot.slane %v329, 5
        %v521 = vrot.slane %v330, 5
        %v522 = vrot.slane %v331, 5
        %v523 = vrot.slane %v332, 5
        %v524 = vrot.slane %v333, 5
        %v525 = vrot.slane %v334, 5
        %v526 = vrot.slane %v335, 5
        %v543 = vrot.slane %v233, 4
        %v544 = vrot.slane %v360, 4
        %v545 = vrot.slane %v361, 4
        %v546 = vrot.slane %v362, 4
        %v547 = vrot.slane %v363, 4
        %v548 = vrot.slane %v364, 4
        %v549 = vrot.slane %v365, 4
        %v550 = vrot.slane %v366, 4
        %v551 = vrot.slane %v367, 4
        %v569 = vrot.slane %v392, 4
        %v570 = vrot.slane %v393, 4
        %v571 = vrot.slane %v394, 4
        %v572 = vrot.slane %v395, 4
        %v573 = vrot.slane %v396, 4
        %v574 = vrot.slane %v397, 4
        %v575 = vrot.slane %v398, 4
        %v576 = vrot.slane %v399, 4
        %v593 = vrot.slane %v233, 3
        %v594 = vrot.slane %v424, 3
        %v595 = vrot.slane %v425, 3
        %v596 = vrot.slane %v426, 3
        %v597 = vrot.slane %v427, 3
        %v598 = vrot.slane %v428, 3
        %v599 = vrot.slane %v429, 3
        %v600 = vrot.slane %v430, 3
        %v601 = vrot.slane %v431, 3
        %v611 = vrot.slane 0.0, 3
        %v612 = vrot.slane %v170, 3
        %v613 = vrot.slane %v176, 3
        %v614 = vrot.slane %v179, 3
        %v615 = vrot.slane %v182, 3
        %v616 = vrot.slane %v185, 3
        %v617 = vrot.slane %v188, 3
        %v618 = vrot.slane %v191, 3
        %v619 = vrot.slane %v173, 3
        %vm629 = vcmask 1040384
        %v630 = vsel %vm629, 0.0, %v440
        %v631 = vsel %vm629, 0.0, %v441
        %v632 = vsel %vm629, 0.0, %v442
        %v633 = vsel %vm629, 0.0, %v443
        %v634 = vsel %vm629, 0.0, %v444
        %v635 = vsel %vm629, 0.0, %v445
        %v636 = vsel %vm629, 0.0, %v446
        %v637 = vsel %vm629, 0.0, %v447
        %v638 = vsel %vm629, 0.0, %v448
        %vm639 = vcmask 1041408
        %v640 = vsel %vm639, %v630, %v467
        %v641 = vsel %vm639, %v631, %v468
        %v642 = vsel %vm639, %v632, %v469
        %v643 = vsel %vm639, %v633, %v470
        %v644 = vsel %vm639, %v634, %v471
        %v645 = vsel %vm639, %v635, %v472
        %v646 = vsel %vm639, %v636, %v473
        %v647 = vsel %vm639, %v637, %v474
        %v648 = vsel %vm639, %v638, %v475
        %vm649 = vcmask 1042432
        %v650 = vsel %vm649, %v640, %v493
        %v651 = vsel %vm649, %v641, %v494
        %v652 = vsel %vm649, %v642, %v495
        %v653 = vsel %vm649, %v643, %v496
        %v654 = vsel %vm649, %v644, %v497
        %v655 = vsel %vm649, %v645, %v498
        %v656 = vsel %vm649, %v646, %v499
        %v657 = vsel %vm649, %v647, %v500
        %v658 = vsel %vm649, %v648, %v501
        %vm659 = vcmask 1043456
        %v660 = vsel %vm659, %v650, %v493
        %v661 = vsel %vm659, %v651, %v519
        %v662 = vsel %vm659, %v652, %v520
        %v663 = vsel %vm659, %v653, %v521
        %v664 = vsel %vm659, %v654, %v522
        %v665 = vsel %vm659, %v655, %v523
        %v666 = vsel %vm659, %v656, %v524
        %v667 = vsel %vm659, %v657, %v525
        %v668 = vsel %vm659, %v658, %v526
        %vm669 = vcmask 1044480
        %v670 = vsel %vm669, %v660, %v543
        %v671 = vsel %vm669, %v661, %v544
        %v672 = vsel %vm669, %v662, %v545
        %v673 = vsel %vm669, %v663, %v546
        %v674 = vsel %vm669, %v664, %v547
        %v675 = vsel %vm669, %v665, %v548
        %v676 = vsel %vm669, %v666, %v549
        %v677 = vsel %vm669, %v667, %v550
        %v678 = vsel %vm669, %v668, %v551
        %vm679 = vcmask 1045504
        %v680 = vsel %vm679, %v670, %v543
        %v681 = vsel %vm679, %v671, %v569
        %v682 = vsel %vm679, %v672, %v570
        %v683 = vsel %vm679, %v673, %v571
        %v684 = vsel %vm679, %v674, %v572
        %v685 = vsel %vm679, %v675, %v573
        %v686 = vsel %vm679, %v676, %v574
        %v687 = vsel %vm679, %v677, %v575
        %v688 = vsel %vm679, %v678, %v576
        %vm689 = vcmask 1046528
        %v690 = vsel %vm689, %v680, %v593
        %v691 = vsel %vm689, %v681, %v594
        %v692 = vsel %vm689, %v682, %v595
        %v693 = vsel %vm689, %v683, %v596
        %v694 = vsel %vm689, %v684, %v597
        %v695 = vsel %vm689, %v685, %v598
        %v696 = vsel %vm689, %v686, %v599
        %v697 = vsel %vm689, %v687, %v600
        %v698 = vsel %vm689, %v688, %v601
        %v699 = vsel %vm629, %v611, 0.0
        %v700 = vsel %vm629, %v612, 0.0
        %v701 = vsel %vm629, %v613, 0.0
        %v702 = vsel %vm629, %v614, 0.0
        %v703 = vsel %vm629, %v615, 0.0
        %v704 = vsel %vm629, %v616, 0.0
        %v705 = vsel %vm629, %v617, 0.0
        %v706 = vsel %vm629, %v618, 0.0
        %v707 = vsel %vm629, %v619, 0.0
        %v708 = vpack.c.bf16 %v699, %v690
        %v709 = vpack.c.bf16 %v700, %v691
        %v710 = vpack.c.bf16 %v701, %v692
        %v711 = vpack.c.bf16 %v702, %v693
        %v712 = vpack.c.bf16 %v703, %v694
        %v713 = vpack.c.bf16 %v704, %v695
        %v714 = vpack.c.bf16 %v705, %v696
        %v715 = vpack.c.bf16 %v706, %v697
        %v716 = vpack.c.bf16 %v707, %v698
        %v718 = vshrl.u32 %v708, 16
        %v720 = vshll.u32 %v708, 16
        %v722 = vrot.slane %v720, 1
        %v723 = vor.u32 %v718, %v722
        %v725 = vshrl.u32 %v709, 16
        %v727 = vshll.u32 %v709, 16
        %v729 = vrot.slane %v727, 1
        %v730 = vor.u32 %v725, %v729
        %v732 = vshrl.u32 %v710, 16
        %v734 = vshll.u32 %v710, 16
        %v736 = vrot.slane %v734, 1
        %v737 = vor.u32 %v732, %v736
        %v739 = vshrl.u32 %v711, 16
        %v741 = vshll.u32 %v711, 16
        %v743 = vrot.slane %v741, 1
        %v744 = vor.u32 %v739, %v743
        %v746 = vshrl.u32 %v712, 16
        %v748 = vshll.u32 %v712, 16
        %v750 = vrot.slane %v748, 1
        %v751 = vor.u32 %v746, %v750
        %v753 = vshrl.u32 %v713, 16
        %v755 = vshll.u32 %v713, 16
        %v757 = vrot.slane %v755, 1
        %v758 = vor.u32 %v753, %v757
        %v760 = vshrl.u32 %v714, 16
        %v762 = vshll.u32 %v714, 16
        %v764 = vrot.slane %v762, 1
        %v765 = vor.u32 %v760, %v764
        %v767 = vshrl.u32 %v715, 16
        %v769 = vshll.u32 %v715, 16
        %v771 = vrot.slane %v769, 1
        %v772 = vor.u32 %v767, %v771
        %773 = vrot.lane.b32.xlu0 %v723, 16
        %v774 = vpop.permute.xlu0 %773
        %775 = vrot.lane.b32.xlu0 %v730, 16
        %v776 = vpop.permute.xlu0 %775
        %777 = vrot.lane.b32.xlu0 %v737, 16
        %v778 = vpop.permute.xlu0 %777
        %779 = vrot.lane.b32.xlu0 %v744, 16
        %v780 = vpop.permute.xlu0 %779
        %781 = vrot.lane.b32.xlu0 %v751, 16
        %v782 = vpop.permute.xlu0 %781
        %783 = vrot.lane.b32.xlu0 %v758, 16
        %v784 = vpop.permute.xlu0 %783
        %785 = vrot.lane.b32.xlu0 %v765, 16
        %v786 = vpop.permute.xlu0 %785
        %787 = vrot.lane.b32.xlu0 %v772, 16
        %v788 = vpop.permute.xlu0 %787
        %v797 = vrot.slane %v708, 1
        %v798 = vrot.slane %v709, 1
        %v799 = vrot.slane %v710, 1
        %v800 = vrot.slane %v711, 1
        %v801 = vrot.slane %v712, 1
        %v802 = vrot.slane %v713, 1
        %v803 = vrot.slane %v714, 1
        %v804 = vrot.slane %v715, 1
        %805 = vrot.lane.b32.xlu0 %v797, 32
        %v806 = vpop.permute.xlu0 %805
        %807 = vrot.lane.b32.xlu0 %v798, 32
        %v808 = vpop.permute.xlu0 %807
        %809 = vrot.lane.b32.xlu0 %v799, 32
        %v810 = vpop.permute.xlu0 %809
        %811 = vrot.lane.b32.xlu0 %v800, 32
        %v812 = vpop.permute.xlu0 %811
        %813 = vrot.lane.b32.xlu0 %v801, 32
        %v814 = vpop.permute.xlu0 %813
        %815 = vrot.lane.b32.xlu0 %v802, 32
        %v816 = vpop.permute.xlu0 %815
        %817 = vrot.lane.b32.xlu0 %v803, 32
        %v818 = vpop.permute.xlu0 %817
        %819 = vrot.lane.b32.xlu0 %v804, 32
        %v820 = vpop.permute.xlu0 %819
        %vm821 = vcmask 130048
        %v823 = vsel %vm821, %v708, %v774
        %v825 = vsel %vm821, %v709, %v776
        %v827 = vsel %vm821, %v710, %v778
        %v829 = vsel %vm821, %v711, %v780
        %v831 = vsel %vm821, %v712, %v782
        %v833 = vsel %vm821, %v713, %v784
        %v835 = vsel %vm821, %v714, %v786
        %v837 = vsel %vm821, %v715, %v788
        %vm838 = vcmask 261120
        %v840 = vsel %vm838, %v823, %v806
        %v842 = vsel %vm838, %v825, %v808
        %v844 = vsel %vm838, %v827, %v810
        %v846 = vsel %vm838, %v829, %v812
        %v848 = vsel %vm838, %v831, %v814
        %v850 = vsel %vm838, %v833, %v816
        %v852 = vsel %vm838, %v835, %v818
        %v854 = vsel %vm838, %v837, %v820
        %v855 = vld [vmem:[%s1] sm:$0xf]
        %v856 = vld [vmem:[%s1 + $0x4] sm:$0xf]
        %v857 = vld [vmem:[%s1 + $0x8] sm:$0xf]
        %v858 = vld [vmem:[%s1 + $0xc] sm:$0xf]
        %v859 = vld [vmem:[%s1 + $0x10] sm:$0xf]
        %v860 = vld [vmem:[%s1 + $0x14] sm:$0xf]
        %v862 = vshrl.u32 %v716, 16
        %v864 = vshll.u32 %v716, 16
        %v866 = vrot.slane %v864, 1
        %v867 = vor.u32 %v862, %v866
        %868 = vrot.lane.b32.xlu0 %v867, 16
        %v869 = vpop.permute.xlu0 %868
        %v871 = vrot.slane %v716, 1
        %872 = vrot.lane.b32.xlu0 %v871, 32
        %v873 = vpop.permute.xlu0 %872
        %v875 = vsel %vm821, %v716, %v869
        %v877 = vsel %vm838, %v875, %v873
        %s878 = scalar_lea.vmem %s1, 24
        %v879 = vld [vmem:[%s878] sm:$0xf]
        %v880 = vld [vmem:[%s878 + $0x4] sm:$0xf]
        %v881 = vld [vmem:[%s878 + $0x8] sm:$0xf]
        %v882 = vld [vmem:[%s878 + $0xc] sm:$0xf]
        %v883 = vld [vmem:[%s878 + $0x10] sm:$0xf]
        %v884 = vld [vmem:[%s878 + $0x14] sm:$0xf]
        %v893 = vunpack.c.l.b16 %v842
        %v894 = vunpack.c.l.b16 %v844
        %v895 = vunpack.c.l.b16 %v846
        %v896 = vunpack.c.l.b16 %v848
        %v897 = vunpack.c.l.b16 %v850
        %v898 = vunpack.c.l.b16 %v852
        %v899 = vunpack.c.l.b16 %v854
        %v900 = vunpack.c.l.b16 %v877
        %v901 = vpack.c.b16 %v894, %v893
        %v902 = vpack.c.b16 %v896, %v895
        %v903 = vpack.c.b16 %v898, %v897
        %v904 = vpack.c.b16 %v900, %v899
        %v911 = vunpack.c.l.b16 %v879
        %v912 = vunpack.c.l.b16 %v880
        %v913 = vunpack.c.l.b16 %v881
        %v914 = vunpack.c.l.b16 %v882
        %v915 = vunpack.c.l.b16 %v883
        %v916 = vunpack.c.l.b16 %v884
        %v917 = vpack.c.b16 %v912, %v911
        %v918 = vpack.c.b16 %v914, %v913
        %v919 = vpack.c.b16 %v916, %v915
        %vm923 = vcmask 392192
        %v925 = vsel %vm923, %v901, 0
        %v928 = vsel %vm923, %v902, 0
        %v931 = vsel %vm923, %v903, 0
        %v934 = vsel %vm923, %v904, 0
        %936 = vmatprep.subr.bf16.mxu0 0
        %937 = vmatpush1.bf16.msra.mxu0 %v917
        %938 = vmatprep.subr.bf16.mxu0 0
        %939 = vmatpush1.bf16.msra.mxu0 %v918
        %940 = vmatprep.subr.bf16.mxu0 0
        %941 = vmatpush1.bf16.msra.mxu0 %v919
        %942 = vmatprep.subr.bf16.mxu0 0
        %943 = vmatpush1.bf16.msra.mxu0 0
        %944 = vmatprep.subr.bf16.mxu0 0
        %945 = vmatpush1.bf16.msra.mxu0 0
        %946 = vmatprep.subr.bf16.mxu0 0
        %947 = vmatpush1.bf16.msra.mxu0 0
        %948 = vmatprep.subr.bf16.mxu0 0
        %949 = vmatpush1.bf16.msra.mxu0 0
        %950 = vmatprep.subr.bf16.mxu0 0
        %951 = vmatpush1.bf16.msra.mxu0 0
        %952 = vmatprep.subr.bf16.mxu0 0
        %953 = vmatpush1.bf16.msra.mxu0 0
        %954 = vmatprep.subr.bf16.mxu0 0
        %955 = vmatpush1.bf16.msra.mxu0 0
        %956 = vmatprep.subr.bf16.mxu0 0
        %957 = vmatpush1.bf16.msra.mxu0 0
        %958 = vmatprep.subr.bf16.mxu0 0
        %959 = vmatpush1.bf16.msra.mxu0 0
        %960 = vmatprep.subr.bf16.mxu0 0
        %961 = vmatpush1.bf16.msra.mxu0 0
        %962 = vmatprep.subr.bf16.mxu0 0
        %963 = vmatpush1.bf16.msra.mxu0 0
        %964 = vmatprep.subr.bf16.mxu0 0
        %965 = vmatpush1.bf16.msra.mxu0 0
        %966 = vmatprep.subr.bf16.mxu0 0
        %967 = vmatpush1.bf16.msra.mxu0 0
        %968 = vmatprep.mubr.bf16.mxu0 0
        %969 = vmatmul.mubr.bf16.gmra.mrb[0].mxu0 %v925
        %v970 = vpop.f32.mrb[0].mxu0
        %v971 = vadd.f32 0.0, %v970
        %v972 = vpop.f32.mrb[0].mxu0
        %v973 = vpop.f32.mrb[0].mxu0
        %v974 = vadd.f32 0.0, %v973
        %v975 = vpop.f32.mrb[0].mxu0
        %976 = vmatprep.mubr.bf16.mxu0 0
        %977 = vmatmul.mubr.bf16.gmra.mrb[0].mxu0 %v928
        %v978 = vpop.f32.mrb[0].mxu0
        %v979 = vadd.f32 0.0, %v978
        %v980 = vpop.f32.mrb[0].mxu0
        %v981 = vpop.f32.mrb[0].mxu0
        %v982 = vadd.f32 0.0, %v981
        %v983 = vpop.f32.mrb[0].mxu0
        %984 = vmatprep.mubr.bf16.mxu0 0
        %985 = vmatmul.mubr.bf16.gmra.mrb[0].mxu0 %v931
        %v986 = vpop.f32.mrb[0].mxu0
        %v987 = vadd.f32 0.0, %v986
        %v988 = vpop.f32.mrb[0].mxu0
        %v989 = vpop.f32.mrb[0].mxu0
        %v990 = vadd.f32 0.0, %v989
        %v991 = vpop.f32.mrb[0].mxu0
        %992 = vmatprep.mubr.bf16.mxu0 0
        %993 = vmatmul.mubr.bf16.gmra.mrb[0].mxu0 %v934
        %v994 = vpop.f32.mrb[0].mxu0
        %v995 = vadd.f32 0.0, %v994
        %v996 = vpop.f32.mrb[0].mxu0
        %v997 = vpop.f32.mrb[0].mxu0
        %v998 = vadd.f32 0.0, %v997
        %v999 = vpop.f32.mrb[0].mxu0
        %1000 = vdwg.mxu0
        %v1002 = vunpack.c.l.b16 %v840
        %v1003 = vpack.c.b16 %v893, %v1002
        %v1004 = vpack.c.b16 %v895, %v894
        %v1005 = vpack.c.b16 %v897, %v896
        %v1006 = vpack.c.b16 %v899, %v898
        %v1013 = vunpack.c.l.b16 %v855
        %v1014 = vunpack.c.l.b16 %v856
        %v1015 = vunpack.c.l.b16 %v857
        %v1016 = vunpack.c.l.b16 %v858
        %v1017 = vunpack.c.l.b16 %v859
        %v1018 = vunpack.c.l.b16 %v860
        %v1019 = vpack.c.b16 %v1014, %v1013
        %v1020 = vpack.c.b16 %v1016, %v1015
        %v1021 = vpack.c.b16 %v1018, %v1017
        %v1026 = vsel %vm923, %v1003, 0
        %v1029 = vsel %vm923, %v1004, 0
        %v1032 = vsel %vm923, %v1005, 0
        %v1035 = vsel %vm923, %v1006, 0
        %1037 = vmatprep.subr.bf16.mxu0 0
        %1038 = vmatpush1.bf16.msra.mxu0 %v1019
        %1039 = vmatprep.subr.bf16.mxu0 0
        %1040 = vmatpush1.bf16.msra.mxu0 %v1020
        %1041 = vmatprep.subr.bf16.mxu0 0
        %1042 = vmatpush1.bf16.msra.mxu0 %v1021
        %1043 = vmatprep.subr.bf16.mxu0 0
        %1044 = vmatpush1.bf16.msra.mxu0 0
        %1045 = vmatprep.subr.bf16.mxu0 0
        %1046 = vmatpush1.bf16.msra.mxu0 0
        %1047 = vmatprep.subr.bf16.mxu0 0
        %1048 = vmatpush1.bf16.msra.mxu0 0
        %1049 = vmatprep.subr.bf16.mxu0 0
        %1050 = vmatpush1.bf16.msra.mxu0 0
        %1051 = vmatprep.subr.bf16.mxu0 0
        %1052 = vmatpush1.bf16.msra.mxu0 0
        %1053 = vmatprep.subr.bf16.mxu0 0
        %1054 = vmatpush1.bf16.msra.mxu0 0
        %1055 = vmatprep.subr.bf16.mxu0 0
        %1056 = vmatpush1.bf16.msra.mxu0 0
        %1057 = vmatprep.subr.bf16.mxu0 0
        %1058 = vmatpush1.bf16.msra.mxu0 0
        %1059 = vmatprep.subr.bf16.mxu0 0
        %1060 = vmatpush1.bf16.msra.mxu0 0
        %1061 = vmatprep.subr.bf16.mxu0 0
        %1062 = vmatpush1.bf16.msra.mxu0 0
        %1063 = vmatprep.subr.bf16.mxu0 0
        %1064 = vmatpush1.bf16.msra.mxu0 0
        %1065 = vmatprep.subr.bf16.mxu0 0
        %1066 = vmatpush1.bf16.msra.mxu0 0
        %1067 = vmatprep.subr.bf16.mxu0 0
        %1068 = vmatpush1.bf16.msra.mxu0 0
        %1069 = vmatprep.mubr.bf16.mxu0 0
        %1070 = vmatmul.mubr.bf16.gmra.mrb[0].mxu0 %v1026
        %v1071 = vpop.f32.mrb[0].mxu0
        %v1072 = vadd.f32 %v971, %v1071
        %v1073 = vpop.f32.mrb[0].mxu0
        %v1074 = vpop.f32.mrb[0].mxu0
        %v1075 = vadd.f32 %v974, %v1074
        %v1076 = vpop.f32.mrb[0].mxu0
        %1077 = vmatprep.mubr.bf16.mxu0 0
        %1078 = vmatmul.mubr.bf16.gmra.mrb[0].mxu0 %v1029
        %v1079 = vpop.f32.mrb[0].mxu0
        %v1080 = vadd.f32 %v979, %v1079
        %v1081 = vpop.f32.mrb[0].mxu0
        %v1082 = vpop.f32.mrb[0].mxu0
        %v1083 = vadd.f32 %v982, %v1082
        %v1084 = vpop.f32.mrb[0].mxu0
        %1085 = vmatprep.mubr.bf16.mxu0 0
        %1086 = vmatmul.mubr.bf16.gmra.mrb[0].mxu0 %v1032
        %v1087 = vpop.f32.mrb[0].mxu0
        %v1088 = vadd.f32 %v987, %v1087
        %v1089 = vpop.f32.mrb[0].mxu0
        %v1090 = vpop.f32.mrb[0].mxu0
        %v1091 = vadd.f32 %v990, %v1090
        %v1092 = vpop.f32.mrb[0].mxu0
        %1093 = vmatprep.mubr.bf16.mxu0 0
        %1094 = vmatmul.mubr.bf16.gmra.mrb[0].mxu0 %v1035
        %v1095 = vpop.f32.mrb[0].mxu0
        %v1096 = vadd.f32 %v995, %v1095
        %v1097 = vpop.f32.mrb[0].mxu0
        %v1098 = vpop.f32.mrb[0].mxu0
        %v1099 = vadd.f32 %v998, %v1098
        %v1100 = vpop.f32.mrb[0].mxu0
        %1101 = vdwg.mxu0
        %s1102 = scalar_lea.vmem %s1, 48
        %v1103 = vld [vmem:[%s1102] sm:$0xf]
        %v1104 = vld [vmem:[%s1102 + $0x4] sm:$0xf]
        %v1105 = vld [vmem:[%s1102 + $0x8] sm:$0xf]
        %v1106 = vld [vmem:[%s1102 + $0xc] sm:$0xf]
        %v1107 = vld [vmem:[%s1102 + $0x10] sm:$0xf]
        %v1108 = vld [vmem:[%s1102 + $0x14] sm:$0xf]
        %v1109 = vpack.c.b16 %v1002, %v900
        %v1116 = vunpack.c.l.b16 %v1103
        %v1117 = vunpack.c.l.b16 %v1104
        %v1118 = vunpack.c.l.b16 %v1105
        %v1119 = vunpack.c.l.b16 %v1106
        %v1120 = vunpack.c.l.b16 %v1107
        %v1121 = vunpack.c.l.b16 %v1108
        %v1122 = vpack.c.b16 %v1117, %v1116
        %v1123 = vpack.c.b16 %v1119, %v1118
        %v1124 = vpack.c.b16 %v1121, %v1120
        %v1129 = vsel %vm923, %v1109, 0
        %1131 = vmatprep.subr.bf16.mxu0 0
        %1132 = vmatpush1.bf16.msra.mxu0 %v1122
        %1133 = vmatprep.subr.bf16.mxu0 0
        %1134 = vmatpush1.bf16.msra.mxu0 %v1123
        %1135 = vmatprep.subr.bf16.mxu0 0
        %1136 = vmatpush1.bf16.msra.mxu0 %v1124
        %1137 = vmatprep.subr.bf16.mxu0 0
        %1138 = vmatpush1.bf16.msra.mxu0 0
        %1139 = vmatprep.subr.bf16.mxu0 0
        %1140 = vmatpush1.bf16.msra.mxu0 0
        %1141 = vmatprep.subr.bf16.mxu0 0
        %1142 = vmatpush1.bf16.msra.mxu0 0
        %1143 = vmatprep.subr.bf16.mxu0 0
        %1144 = vmatpush1.bf16.msra.mxu0 0
        %1145 = vmatprep.subr.bf16.mxu0 0
        %1146 = vmatpush1.bf16.msra.mxu0 0
        %1147 = vmatprep.subr.bf16.mxu0 0
        %1148 = vmatpush1.bf16.msra.mxu0 0
        %1149 = vmatprep.subr.bf16.mxu0 0
        %1150 = vmatpush1.bf16.msra.mxu0 0
        %1151 = vmatprep.subr.bf16.mxu0 0
        %1152 = vmatpush1.bf16.msra.mxu0 0
        %1153 = vmatprep.subr.bf16.mxu0 0
        %1154 = vmatpush1.bf16.msra.mxu0 0
        %1155 = vmatprep.subr.bf16.mxu0 0
        %1156 = vmatpush1.bf16.msra.mxu0 0
        %1157 = vmatprep.subr.bf16.mxu0 0
        %1158 = vmatpush1.bf16.msra.mxu0 0
        %1159 = vmatprep.subr.bf16.mxu0 0
        %1160 = vmatpush1.bf16.msra.mxu0 0
        %1161 = vmatprep.subr.bf16.mxu0 0
        %1162 = vmatpush1.bf16.msra.mxu0 0
        %1163 = vmatprep.mubr.bf16.mxu0 0
        %1164 = vmatmul.mubr.bf16.gmra.mrb[0].mxu0 %v1029
        %v1165 = vpop.f32.mrb[0].mxu0
        %v1166 = vadd.f32 0.0, %v1165
        %v1167 = vpop.f32.mrb[0].mxu0
        %v1168 = vpop.f32.mrb[0].mxu0
        %v1169 = vadd.f32 0.0, %v1168
        %v1170 = vpop.f32.mrb[0].mxu0
        %1171 = vmatprep.mubr.bf16.mxu0 0
        %1172 = vmatmul.mubr.bf16.gmra.mrb[0].mxu0 %v1032
        %v1173 = vpop.f32.mrb[0].mxu0
        %v1174 = vadd.f32 0.0, %v1173
        %v1175 = vpop.f32.mrb[0].mxu0
        %v1176 = vpop.f32.mrb[0].mxu0
        %v1177 = vadd.f32 0.0, %v1176
        %v1178 = vpop.f32.mrb[0].mxu0
        %1179 = vmatprep.mubr.bf16.mxu0 0
        %1180 = vmatmul.mubr.bf16.gmra.mrb[0].mxu0 %v1035
        %v1181 = vpop.f32.mrb[0].mxu0
        %v1182 = vadd.f32 0.0, %v1181
        %v1183 = vpop.f32.mrb[0].mxu0
        %v1184 = vpop.f32.mrb[0].mxu0
        %v1185 = vadd.f32 0.0, %v1184
        %v1186 = vpop.f32.mrb[0].mxu0
        %1187 = vmatprep.mubr.bf16.mxu0 0
        %1188 = vmatmul.mubr.bf16.gmra.mrb[0].mxu0 %v1129
        %v1189 = vpop.f32.mrb[0].mxu0
        %v1190 = vadd.f32 0.0, %v1189
        %v1191 = vpop.f32.mrb[0].mxu0
        %v1192 = vpop.f32.mrb[0].mxu0
        %v1193 = vadd.f32 0.0, %v1192
        %v1194 = vpop.f32.mrb[0].mxu0
        %1195 = vdwg.mxu0
        %v1196 = vadd.f32 %v1072, %v1166
        %v1197 = vadd.f32 %v1075, %v1169
        %v1198 = vadd.f32 %v1080, %v1174
        %v1199 = vadd.f32 %v1083, %v1177
        %v1200 = vadd.f32 %v1088, %v1182
        %v1201 = vadd.f32 %v1091, %v1185
        %v1202 = vadd.f32 %v1096, %v1190
        %v1203 = vadd.f32 %v1099, %v1193
        %v1204 = vld [vmem:[%s2] sm:$0x1]
        %v1206 = vlaneseq
        %v1207 = vshrl.u32 %v1206, 7
        %v1208 = vsub.s32 0, %v1207
        %v1209 = vrot.slane %v1204, %v1208
        %v1211 = vadd.f32 %v1196, %v1209
        %v1212 = vadd.f32 %v1197, %v1209
        %v1213 = vadd.f32 %v1198, %v1209
        %v1214 = vadd.f32 %v1199, %v1209
        %v1215 = vadd.f32 %v1200, %v1209
        %v1216 = vadd.f32 %v1201, %v1209
        %v1217 = vadd.f32 %v1202, %v1209
        %v1218 = vadd.f32 %v1203, %v1209
        %vm1219 = vcmask 64512
        %1220 = vst.msk [vmem:[%s163] sm:$0xff] %vm1219, %v1211
        %1221 = vst.msk [vmem:[%s163 + $0x8] sm:$0xff] %vm1219, %v1212
        %1222 = vst.msk [vmem:[%s163 + $0x10] sm:$0xff] %vm1219, %v1213
        %1223 = vst.msk [vmem:[%s163 + $0x18] sm:$0xff] %vm1219, %v1214
        %1224 = vst.msk [vmem:[%s163 + $0x20] sm:$0xff] %vm1219, %v1215
        %1225 = vst.msk [vmem:[%s163 + $0x28] sm:$0xff] %vm1219, %v1216
        %1226 = vst.msk [vmem:[%s163 + $0x30] sm:$0xff] %vm1219, %v1217
        %1227 = vst.msk [vmem:[%s163 + $0x38] sm:$0xff] %vm1219, %v1218
        %s1228 = sand.u32 %s93, 1
        %s1229 = scalar_lea.sflag [#allocation3], %s1228
        %s1230 = sand.u32 %s93, 1
        %s1231 = smul.addr %s1230, 64
        %s1232 = scalar_lea.vmem [#allocation2], %s1231
        // Predicated region
        $region33: #{tpu_custom_call.1} parent=31 // pred_check
          %p1233 = pneg %p103
        $region34: #{tpu_custom_call.1} parent=31 // pred_check_branch
          %1235 = sbr.rel (%p1233) target = $region36
        $region35: #{tpu_custom_call.1} parent=31 // pred_region
          %s1237 = ssub.s32 1024, 1024
          %1238 = vsyncadd %s1229, %s1237
          %s1239 = smul.addr %s17, 8
          %s1240 = smul.addr %s1239, 128
          %s1241 = scalar_lea.hbm %s3, %s1240
          %s1242 = sshll.u32 %s1232, 4
          %s1243 = int_to_ptr.vmem [resolvable:$true] %s1242
          %1248 = dma.vmem_to_hbm [thread:$0]  %s1243, 1024, %s1241, %s1229, 128, 128, 8
        $region36: #{tpu_custom_call.1} parent=31 // pred_fallthru
          _
      $region32: #{tpu_custom_call.1} parent=5 // pred_fallthru
        _
      %p1249 = scmp.le.s32.totalorder 2, %s12
      // Predicated region
      $region37: #{tpu_custom_call.1} parent=5 // pred_check
        %p1250 = pneg %p1249
      $region38: #{tpu_custom_call.1} parent=5 // pred_check_branch
        %1252 = sbr.rel (%p1250) target = $region40
      $region39: #{tpu_custom_call.1} parent=5 // pred_region
        %s1253 = ssub.s32 %s12, 2
        // Predicated region
        $region41: #{tpu_custom_call.1} parent=39 // pred_check
          %p1254 = pneg %p109
        $region42: #{tpu_custom_call.1} parent=39 // pred_check_branch
          %1256 = sbr.rel (%p1254) target = $region44
        $region43: #{tpu_custom_call.1} parent=39 // pred_region
          %s1257 = sand.u32 %s94, 1
          %s1258 = scalar_lea.sflag [#allocation3], %s1257
          %s1259 = sand.u32 %s94, 1
          %s1260 = smul.addr %s1259, 64
          %s1261 = scalar_lea.vmem [#allocation2], %s1260
          %1262 = dma.done %s1258, 1024
        $region44: #{tpu_custom_call.1} parent=39 // pred_fallthru
          _
      $region40: #{tpu_custom_call.1} parent=5 // pred_fallthru
        _
    $region6: #{tpu_custom_call.1} parent=1 // loop_footer
      %s16 = sadd.s32 1, %s12
    $region7: #{tpu_custom_call.1} parent=1 // loop_footer_branch
      %11 = sbr.rel target = $region3
    $region8: #{tpu_custom_call.1} parent=1 // loop_exit
      _
    %1263 = vsyncpa [#allocation3], 1
    %s1264 = scalar_lea.sflag [#allocation3], 1
    %1265 = vsyncpa %s1264, 1

</llo_original>
